<compile_context>
chip_gen: v7x
topology: tpu7x:2x2x1
jax: 0.10.0
libtpu: 0.0.40
codegen_flags: <defaults>
</compile_context>

<pallas_src>
import jax
import jax.numpy as jnp
from jax import lax
from jax.experimental import pallas as pl
from jax.experimental.pallas import tpu as pltpu


def _round_up(n, m):
    return -(-n // m) * m


def pack_params(params):
    """Pack [(W (out,in), b (out,)) ...] into one padded f32 slab.

    Layer i occupies rows [row_off_i, row_off_i + out_i); columns [0, in_i) hold W_i and
    column in_i holds b_i.  Returns (slab, layer_dims) with layer_dims = ((out_i, in_i), ...).
    """
    layer_dims = tuple((W.shape[0], W.shape[1]) for W, _ in params)
    total_rows = sum(o for o, _ in layer_dims)
    max_cols = max(i for _, i in layer_dims) + 1
    rows = _round_up(total_rows, 8)
    cols = _round_up(max_cols, 128)
    slab = jnp.zeros((rows, cols), jnp.float32)
    off = 0
    for (W, b), (out_i, in_i) in zip(params, layer_dims):
        slab = slab.at[off:off + out_i, :in_i].set(W.astype(jnp.float32))
        slab = slab.at[off:off + out_i, in_i].set(b.reshape(-1).astype(jnp.float32))
        off += out_i
    return slab, layer_dims


def make_mlp_kernel(layer_dims):
    num_layers = len(layer_dims)

    def kernel(x_ref, p_ref, o_ref):
        # x_ref: (batch_tile, in_dim)   natural layout
        # p_ref: (rows, cols)           packed [W | b] slab, resident in VMEM
        # o_ref: (out_dim, batch_tile)  lane-dense transposed output
        x = x_ref[...].astype(jnp.float32)
        slab = p_ref[...]
        h = x
        off = 0
        for i, (out_i, in_i) in enumerate(layer_dims):
            w = slab[off:off + out_i, :in_i]            # (out_i, in_i)  PyTorch layout
            b = slab[off:off + out_i, in_i:in_i + 1]    # (out_i, 1)  -> lane broadcast
            if i == 0:
                # Fused transpose: contract dim 1 of W with dim 1 of x -> (out_0, batch)
                h = lax.dot_general(w, h, (((1,), (1,)), ((), ())),
                                    preferred_element_type=jnp.float32) + b
            else:
                h = jnp.dot(w, h, preferred_element_type=jnp.float32) + b
            if i < num_layers - 1:                       # ReLU on hidden layers only
                h = jnp.maximum(h, 0.0)
            off += out_i
        o_ref[...] = h.astype(o_ref.dtype)

    return kernel


def _choose_batch_tile(B, in_dim, out_dim, vmem_budget_bytes):
    """Largest batch tile that fits the VMEM budget; single grid step if possible."""
    itemsize = 4
    bytes_per_row = 2 * (in_dim + out_dim) * itemsize   # double-buffered input + output blocks
    max_rows = max(vmem_budget_bytes // bytes_per_row, 128)
    if B <= max_rows:
        return B            # one grid step: no repeated per-step pipeline overhead
    return max((max_rows // 128) * 128, 128)             # lane-dense multi-step tile


def simplenet_forward(x, params, *, vmem_budget_bytes=24 << 20):
    """x: (B, in_dim) float32.  params: [(W (out,in), b (out,))].  Returns (B, 1)."""
    B, in_dim = x.shape
    out_dim = params[-1][0].shape[0]

    slab, layer_dims = pack_params(params)
    tile = _choose_batch_tile(B, in_dim, out_dim, vmem_budget_bytes)

    # Pad batch to a multiple of the tile (only matters for multi-step grids at huge B).
    Bp = _round_up(B, tile)
    xp = x if Bp == B else jnp.pad(x, ((0, Bp - B), (0, 0)))
    num_tiles = Bp // tile

    out_t = pl.pallas_call(
        make_mlp_kernel(layer_dims),
        out_shape=jax.ShapeDtypeStruct((out_dim, Bp), x.dtype),
        grid=(num_tiles,),
        in_specs=[
            pl.BlockSpec((tile, in_dim), lambda i: (i, 0)),     # natural-layout x tile
            pl.BlockSpec(slab.shape, lambda i: (0, 0)),         # resident packed params
        ],
        out_specs=pl.BlockSpec((out_dim, tile), lambda i: (0, i)),  # lane-dense store
        compiler_params=pltpu.CompilerParams(
            dimension_semantics=("arbitrary",),
            # v5e scoped default is only 16 MiB; 32 MiB is safe on v5e/v6e/v7x.
            vmem_limit_bytes=32 << 20,
        ),
    )(xp, slab)

    out = out_t.reshape(Bp, out_dim)   # (1, Bp) -> (Bp, 1): bitcast, no transpose kernel
    return out if Bp == B else out[:B]


def init_params(key, layer_sizes, in_size=4, out_size=1):
    """PyTorch-style init: U(-1/sqrt(fan_in), 1/sqrt(fan_in)); W in (out, in) layout."""
    sizes = [in_size] + list(layer_sizes) + [out_size]
    params = []
    for i in range(len(sizes) - 1):
        fan_in, fan_out = sizes[i], sizes[i + 1]
        key, kw, kb = jax.random.split(key, 3)
        bound = 1.0 / (fan_in ** 0.5)
        W = jax.random.uniform(kw, (fan_out, fan_in), jnp.float32, -bound, bound)
        b = jax.random.uniform(kb, (fan_out,), jnp.float32, -bound, bound)
        params.append((W, b))
    return params


def reference_forward(x, params):
    h = x
    for i, (W, b) in enumerate(params):
        h = h @ W.T + b
        if i < len(params) - 1:
            h = jnp.maximum(h, 0.0)
    return h


if __name__ == "__main__":
    key = jax.random.PRNGKey(0)
    kx, kp = jax.random.split(key)

    layer_sizes = [32, 32]          # hidden layer sizes (module arg)
    B = 1024                        # fits the VMEM budget -> single grid step
    x = jax.random.normal(kx, (B, 4), jnp.float32)

    params = init_params(kp, layer_sizes)

    out = jax.block_until_ready(simplenet_forward(x, params))
    ref = reference_forward(x, params)

    assert out.shape == (B, 1)
    assert jnp.allclose(out, ref, rtol=1e-4, atol=1e-4), "mismatch vs reference"

    print("KERNEL_OK")
</pallas_src>

<mosaic_0001>
module attributes {stable_mosaic.version = 11 : i64} {
  func.func @kernel(%arg0: i32, %arg1: memref<1024x4xf32, #tpu.memory_space<vmem>>, %arg2: memref<72x128xf32, #tpu.memory_space<vmem>>, %arg3: memref<1x1024xf32, #tpu.memory_space<vmem>>) attributes {dimension_semantics = [#tpu.dimension_semantics<arbitrary>], iteration_bounds = array<i64: 1>, scalar_prefetch = 0 : i64, scratch_operands = 0 : i64, tpu.core_type = #tpu.core_type<tc>, window_params = [{transform_indices = @transform_0, window_bounds = array<i64: 1024, 4>}, {pipeline_mode = #tpu.pipeline_mode<synchronous>, transform_indices = @transform_1, window_bounds = array<i64: 72, 128>}, {transform_indices = @transform_2, window_bounds = array<i64: 1, 1024>}]} {
    %c0 = arith.constant 0 : index
    %c0_0 = arith.constant 0 : index
    %0 = vector.load %arg1[%c0, %c0_0] : memref<1024x4xf32, #tpu.memory_space<vmem>>, vector<1024x4xf32>
    %c0_1 = arith.constant 0 : index
    %c0_2 = arith.constant 0 : index
    %1 = vector.load %arg2[%c0_1, %c0_2] : memref<72x128xf32, #tpu.memory_space<vmem>>, vector<72x128xf32>
    %2 = vector.extract_strided_slice %1 {offsets = [0, 0], sizes = [32, 4], strides = [1, 1]} : vector<72x128xf32> to vector<32x4xf32>
    %3 = vector.extract_strided_slice %1 {offsets = [0, 4], sizes = [32, 1], strides = [1, 1]} : vector<72x128xf32> to vector<32x1xf32>
    %cst = arith.constant dense<0.000000e+00> : vector<32x1024xf32>
    %4 = tpu.matmul %2, %0, %cst {dimension_numbers = #tpu.dot_dimension_numbers<[1], [1], [0], [0], [0, 0, 1, 0], [], []>} : vector<32x4xf32>, vector<1024x4xf32>, vector<32x1024xf32> -> vector<32x1024xf32>
    %5 = vector.broadcast %3 : vector<32x1xf32> to vector<32x1024xf32>
    %6 = arith.addf %4, %5 : vector<32x1024xf32>
    %cst_3 = arith.constant 0.000000e+00 : f32
    %7 = vector.broadcast %cst_3 : f32 to vector<32x1024xf32>
    %8 = arith.maximumf %6, %7 : vector<32x1024xf32>
    %9 = vector.extract_strided_slice %1 {offsets = [32, 0], sizes = [32, 32], strides = [1, 1]} : vector<72x128xf32> to vector<32x32xf32>
    %10 = vector.extract_strided_slice %1 {offsets = [32, 32], sizes = [32, 1], strides = [1, 1]} : vector<72x128xf32> to vector<32x1xf32>
    %cst_4 = arith.constant dense<0.000000e+00> : vector<32x1024xf32>
    %11 = tpu.matmul %9, %8, %cst_4 {dimension_numbers = #tpu.dot_dimension_numbers<[1], [0], [0], [1], [0, 0, 1, 1], [], []>} : vector<32x32xf32>, vector<32x1024xf32>, vector<32x1024xf32> -> vector<32x1024xf32>
    %12 = vector.broadcast %10 : vector<32x1xf32> to vector<32x1024xf32>
    %13 = arith.addf %11, %12 : vector<32x1024xf32>
    %cst_5 = arith.constant 0.000000e+00 : f32
    %14 = vector.broadcast %cst_5 : f32 to vector<32x1024xf32>
    %15 = arith.maximumf %13, %14 : vector<32x1024xf32>
    %16 = vector.extract_strided_slice %1 {offsets = [64, 0], sizes = [1, 32], strides = [1, 1]} : vector<72x128xf32> to vector<1x32xf32>
    %17 = vector.extract_strided_slice %1 {offsets = [64, 32], sizes = [1, 1], strides = [1, 1]} : vector<72x128xf32> to vector<1x1xf32>
    %cst_6 = arith.constant dense<0.000000e+00> : vector<1x1024xf32>
    %18 = tpu.matmul %16, %15, %cst_6 {dimension_numbers = #tpu.dot_dimension_numbers<[1], [0], [0], [1], [0, 0, 1, 1], [], []>} : vector<1x32xf32>, vector<32x1024xf32>, vector<1x1024xf32> -> vector<1x1024xf32>
    %19 = vector.broadcast %17 : vector<1x1xf32> to vector<1x1024xf32>
    %20 = arith.addf %18, %19 : vector<1x1024xf32>
    %c0_7 = arith.constant 0 : index
    %c0_8 = arith.constant 0 : index
    %21 = vector.load %arg3[%c0_7, %c0_8] : memref<1x1024xf32, #tpu.memory_space<vmem>>, vector<1x1024xf32>
    tpu.vector_store %arg3[%c0_7, %c0_8], %20 {strides = array<i32>} : memref<1x1024xf32, #tpu.memory_space<vmem>>, vector<1x1024xf32>,
    return
  }
  func.func @transform_0(%arg0: i32) -> (i32, i32) {
    %c0_i32 = arith.constant 0 : i32
    %c0_i32_0 = arith.constant 0 : i32
    return %arg0, %c0_i32 : i32, i32
  }
  func.func @transform_1(%arg0: i32) -> (i32, i32) {
    %c0_i32 = arith.constant 0 : i32
    %c0_i32_0 = arith.constant 0 : i32
    %c0_i32_1 = arith.constant 0 : i32
    return %c0_i32, %c0_i32_0 : i32, i32
  }
  func.func @transform_2(%arg0: i32) -> (i32, i32) {
    %c0_i32 = arith.constant 0 : i32
    %c0_i32_0 = arith.constant 0 : i32
    return %c0_i32, %arg0 : i32, i32
  }
}

</mosaic_0001>

<llo_original>
// kernel: tpu_custom_call.1
$region0: #{tpu_custom_call.1}
  #allocation0 [shape = 'u32[]', space=smem, size = 0x4, offset = 0x4, fixed_abs, tag = 'smem constant byte address 0x4 - core index']
  #allocation1 [shape = 'u32[144,128]{1,0:T(1,128)}', space=vmem, size = 0x12000, scoped, tag = 'internal scratch']
  %s0 = inlined_call_operand.vmem [shape: f32[1024,4], index: 0, kind: input, shape index: {}]
  %s1 = inlined_call_operand.vmem [shape: f32[72,128], index: 1, kind: input, shape index: {}]
  %s2 = inlined_call_operand.hbm [shape: f32[1,1024], index: 2, kind: output, shape index: {}]
  %s3 = sld [smem:[#allocation0]]
  $region18: #{tpu_custom_call.1} parent=0
    _
  %s5 = ssub.s32 1, %s3
  %s6 = scalar_select 0, %s5, %s3
  $region1: #{tpu_custom_call.1} parent=0
    #allocation2 [shape = 'u8[4096]{0}', space=vmem, size = 0x1000, scoped, tag = 'output window, operand 0, single buffered']
    #allocation3 [shape = 's32[1]{0}', space=sflag, size = 0x4, scoped, tag = 'scoped memory for tpu_custom_call.1']
    %7 = vsyncpa [#allocation3], 0
    // Predicated region
    $region2: #{tpu_custom_call.1} parent=1 // pred_check
      _
    $region3: #{tpu_custom_call.1} parent=1 // pred_check_branch
      %9 = sbr.rel (0) target = $region5
    $region4: #{tpu_custom_call.1} parent=1 // pred_region
      _
    $region5: #{tpu_custom_call.1} parent=1 // pred_fallthru
      _
    // Predicated region
    $region6: #{tpu_custom_call.1} parent=1 // pred_check
      _
    $region7: #{tpu_custom_call.1} parent=1 // pred_check_branch
      %11 = sbr.rel (0) target = $region9
    $region8: #{tpu_custom_call.1} parent=1 // pred_region
      _
    $region9: #{tpu_custom_call.1} parent=1 // pred_fallthru
      _
    %v12 = vld [vmem:[%s0] sm:$0xff]
    %v13 = vld [vmem:[%s0 + $0x8] sm:$0xff]
    %v14 = vld [vmem:[%s0 + $0x10] sm:$0xff]
    %v15 = vld [vmem:[%s0 + $0x18] sm:$0xff]
    %v16 = vld [vmem:[%s0 + $0x20] sm:$0xff]
    %v17 = vld [vmem:[%s0 + $0x28] sm:$0xff]
    %v18 = vld [vmem:[%s0 + $0x30] sm:$0xff]
    %v19 = vld [vmem:[%s0 + $0x38] sm:$0xff]
    %v20 = vld [vmem:[%s0 + $0x40] sm:$0xff]
    %v21 = vld [vmem:[%s0 + $0x48] sm:$0xff]
    %v22 = vld [vmem:[%s0 + $0x50] sm:$0xff]
    %v23 = vld [vmem:[%s0 + $0x58] sm:$0xff]
    %v24 = vld [vmem:[%s0 + $0x60] sm:$0xff]
    %v25 = vld [vmem:[%s0 + $0x68] sm:$0xff]
    %v26 = vld [vmem:[%s0 + $0x70] sm:$0xff]
    %v27 = vld [vmem:[%s0 + $0x78] sm:$0xff]
    %v28 = vld [vmem:[%s0 + $0x80] sm:$0xff]
    %v29 = vld [vmem:[%s0 + $0x88] sm:$0xff]
    %v30 = vld [vmem:[%s0 + $0x90] sm:$0xff]
    %v31 = vld [vmem:[%s0 + $0x98] sm:$0xff]
    %v32 = vld [vmem:[%s0 + $0xa0] sm:$0xff]
    %v33 = vld [vmem:[%s0 + $0xa8] sm:$0xff]
    %v34 = vld [vmem:[%s0 + $0xb0] sm:$0xff]
    %v35 = vld [vmem:[%s0 + $0xb8] sm:$0xff]
    %v36 = vld [vmem:[%s0 + $0xc0] sm:$0xff]
    %v37 = vld [vmem:[%s0 + $0xc8] sm:$0xff]
    %v38 = vld [vmem:[%s0 + $0xd0] sm:$0xff]
    %v39 = vld [vmem:[%s0 + $0xd8] sm:$0xff]
    %v40 = vld [vmem:[%s0 + $0xe0] sm:$0xff]
    %v41 = vld [vmem:[%s0 + $0xe8] sm:$0xff]
    %v42 = vld [vmem:[%s0 + $0xf0] sm:$0xff]
    %v43 = vld [vmem:[%s0 + $0xf8] sm:$0xff]
    %v44 = vld [vmem:[%s0 + $0x100] sm:$0xff]
    %v45 = vld [vmem:[%s0 + $0x108] sm:$0xff]
    %v46 = vld [vmem:[%s0 + $0x110] sm:$0xff]
    %v47 = vld [vmem:[%s0 + $0x118] sm:$0xff]
    %v48 = vld [vmem:[%s0 + $0x120] sm:$0xff]
    %v49 = vld [vmem:[%s0 + $0x128] sm:$0xff]
    %v50 = vld [vmem:[%s0 + $0x130] sm:$0xff]
    %v51 = vld [vmem:[%s0 + $0x138] sm:$0xff]
    %v52 = vld [vmem:[%s0 + $0x140] sm:$0xff]
    %v53 = vld [vmem:[%s0 + $0x148] sm:$0xff]
    %v54 = vld [vmem:[%s0 + $0x150] sm:$0xff]
    %v55 = vld [vmem:[%s0 + $0x158] sm:$0xff]
    %v56 = vld [vmem:[%s0 + $0x160] sm:$0xff]
    %v57 = vld [vmem:[%s0 + $0x168] sm:$0xff]
    %v58 = vld [vmem:[%s0 + $0x170] sm:$0xff]
    %v59 = vld [vmem:[%s0 + $0x178] sm:$0xff]
    %v60 = vld [vmem:[%s0 + $0x180] sm:$0xff]
    %v61 = vld [vmem:[%s0 + $0x188] sm:$0xff]
    %v62 = vld [vmem:[%s0 + $0x190] sm:$0xff]
    %v63 = vld [vmem:[%s0 + $0x198] sm:$0xff]
    %v64 = vld [vmem:[%s0 + $0x1a0] sm:$0xff]
    %v65 = vld [vmem:[%s0 + $0x1a8] sm:$0xff]
    %v66 = vld [vmem:[%s0 + $0x1b0] sm:$0xff]
    %v67 = vld [vmem:[%s0 + $0x1b8] sm:$0xff]
    %v68 = vld [vmem:[%s0 + $0x1c0] sm:$0xff]
    %v69 = vld [vmem:[%s0 + $0x1c8] sm:$0xff]
    %v70 = vld [vmem:[%s0 + $0x1d0] sm:$0xff]
    %v71 = vld [vmem:[%s0 + $0x1d8] sm:$0xff]
    %v72 = vld [vmem:[%s0 + $0x1e0] sm:$0xff]
    %v73 = vld [vmem:[%s0 + $0x1e8] sm:$0xff]
    %v74 = vld [vmem:[%s0 + $0x1f0] sm:$0xff]
    %v75 = vld [vmem:[%s0 + $0x1f8] sm:$0xff]
    %v76 = vld [vmem:[%s0 + $0x200] sm:$0xff]
    %v77 = vld [vmem:[%s0 + $0x208] sm:$0xff]
    %v78 = vld [vmem:[%s0 + $0x210] sm:$0xff]
    %v79 = vld [vmem:[%s0 + $0x218] sm:$0xff]
    %v80 = vld [vmem:[%s0 + $0x220] sm:$0xff]
    %v81 = vld [vmem:[%s0 + $0x228] sm:$0xff]
    %v82 = vld [vmem:[%s0 + $0x230] sm:$0xff]
    %v83 = vld [vmem:[%s0 + $0x238] sm:$0xff]
    %v84 = vld [vmem:[%s0 + $0x240] sm:$0xff]
    %v85 = vld [vmem:[%s0 + $0x248] sm:$0xff]
    %v86 = vld [vmem:[%s0 + $0x250] sm:$0xff]
    %v87 = vld [vmem:[%s0 + $0x258] sm:$0xff]
    %v88 = vld [vmem:[%s0 + $0x260] sm:$0xff]
    %v89 = vld [vmem:[%s0 + $0x268] sm:$0xff]
    %v90 = vld [vmem:[%s0 + $0x270] sm:$0xff]
    %v91 = vld [vmem:[%s0 + $0x278] sm:$0xff]
    %v92 = vld [vmem:[%s0 + $0x280] sm:$0xff]
    %v93 = vld [vmem:[%s0 + $0x288] sm:$0xff]
    %v94 = vld [vmem:[%s0 + $0x290] sm:$0xff]
    %v95 = vld [vmem:[%s0 + $0x298] sm:$0xff]
    %v96 = vld [vmem:[%s0 + $0x2a0] sm:$0xff]
    %v97 = vld [vmem:[%s0 + $0x2a8] sm:$0xff]
    %v98 = vld [vmem:[%s0 + $0x2b0] sm:$0xff]
    %v99 = vld [vmem:[%s0 + $0x2b8] sm:$0xff]
    %v100 = vld [vmem:[%s0 + $0x2c0] sm:$0xff]
    %v101 = vld [vmem:[%s0 + $0x2c8] sm:$0xff]
    %v102 = vld [vmem:[%s0 + $0x2d0] sm:$0xff]
    %v103 = vld [vmem:[%s0 + $0x2d8] sm:$0xff]
    %v104 = vld [vmem:[%s0 + $0x2e0] sm:$0xff]
    %v105 = vld [vmem:[%s0 + $0x2e8] sm:$0xff]
    %v106 = vld [vmem:[%s0 + $0x2f0] sm:$0xff]
    %v107 = vld [vmem:[%s0 + $0x2f8] sm:$0xff]
    %v108 = vld [vmem:[%s0 + $0x300] sm:$0xff]
    %v109 = vld [vmem:[%s0 + $0x308] sm:$0xff]
    %v110 = vld [vmem:[%s0 + $0x310] sm:$0xff]
    %v111 = vld [vmem:[%s0 + $0x318] sm:$0xff]
    %v112 = vld [vmem:[%s0 + $0x320] sm:$0xff]
    %v113 = vld [vmem:[%s0 + $0x328] sm:$0xff]
    %v114 = vld [vmem:[%s0 + $0x330] sm:$0xff]
    %v115 = vld [vmem:[%s0 + $0x338] sm:$0xff]
    %v116 = vld [vmem:[%s0 + $0x340] sm:$0xff]
    %v117 = vld [vmem:[%s0 + $0x348] sm:$0xff]
    %v118 = vld [vmem:[%s0 + $0x350] sm:$0xff]
    %v119 = vld [vmem:[%s0 + $0x358] sm:$0xff]
    %v120 = vld [vmem:[%s0 + $0x360] sm:$0xff]
    %v121 = vld [vmem:[%s0 + $0x368] sm:$0xff]
    %v122 = vld [vmem:[%s0 + $0x370] sm:$0xff]
    %v123 = vld [vmem:[%s0 + $0x378] sm:$0xff]
    %v124 = vld [vmem:[%s0 + $0x380] sm:$0xff]
    %v125 = vld [vmem:[%s0 + $0x388] sm:$0xff]
    %v126 = vld [vmem:[%s0 + $0x390] sm:$0xff]
    %v127 = vld [vmem:[%s0 + $0x398] sm:$0xff]
    %v128 = vld [vmem:[%s0 + $0x3a0] sm:$0xff]
    %v129 = vld [vmem:[%s0 + $0x3a8] sm:$0xff]
    %v130 = vld [vmem:[%s0 + $0x3b0] sm:$0xff]
    %v131 = vld [vmem:[%s0 + $0x3b8] sm:$0xff]
    %v132 = vld [vmem:[%s0 + $0x3c0] sm:$0xff]
    %v133 = vld [vmem:[%s0 + $0x3c8] sm:$0xff]
    %v134 = vld [vmem:[%s0 + $0x3d0] sm:$0xff]
    %v135 = vld [vmem:[%s0 + $0x3d8] sm:$0xff]
    %v136 = vld [vmem:[%s0 + $0x3e0] sm:$0xff]
    %v137 = vld [vmem:[%s0 + $0x3e8] sm:$0xff]
    %v138 = vld [vmem:[%s0 + $0x3f0] sm:$0xff]
    %v139 = vld [vmem:[%s0 + $0x3f8] sm:$0xff]
    %v140 = vld [vmem:[%s1] sm:$0xff]
    %v141 = vld [vmem:[%s1 + $0x8] sm:$0xff]
    %v142 = vld [vmem:[%s1 + $0x10] sm:$0xff]
    %v143 = vld [vmem:[%s1 + $0x18] sm:$0xff]
    %v144 = vld [vmem:[%s1 + $0x20] sm:$0xff]
    %v145 = vld [vmem:[%s1 + $0x28] sm:$0xff]
    %v146 = vld [vmem:[%s1 + $0x30] sm:$0xff]
    %v147 = vld [vmem:[%s1 + $0x38] sm:$0xff]
    %v148 = vld [vmem:[%s1 + $0x40] sm:$0xff]
    %150 = vset.pattern.permute.xlu0 4
    %151 = vperm.xlu0 %150, %v140
    %v152 = vpop.permute.xlu0 %151
    %155 = vset.pattern.permute.xlu0 4
    %156 = vperm.xlu0 %155, %v141
    %v157 = vpop.permute.xlu0 %156
    %160 = vset.pattern.permute.xlu0 4
    %161 = vperm.xlu0 %160, %v142
    %v162 = vpop.permute.xlu0 %161
    %165 = vset.pattern.permute.xlu0 4
    %166 = vperm.xlu0 %165, %v143
    %v167 = vpop.permute.xlu0 %166
    %vm169 = vcmask 31744
    %v170 = vsel %vm169, %v140, 0
    %v172 = vsel %vm169, %v141, 0
    %v174 = vsel %vm169, %v142, 0
    %v176 = vsel %vm169, %v143, 0
    %v179 = vsel %vm169, %v12, 0
    %v182 = vsel %vm169, %v13, 0
    %v185 = vsel %vm169, %v14, 0
    %v188 = vsel %vm169, %v15, 0
    %v191 = vsel %vm169, %v16, 0
    %v194 = vsel %vm169, %v17, 0
    %v197 = vsel %vm169, %v18, 0
    %v200 = vsel %vm169, %v19, 0
    %v203 = vsel %vm169, %v20, 0
    %v206 = vsel %vm169, %v21, 0
    %v209 = vsel %vm169, %v22, 0
    %v212 = vsel %vm169, %v23, 0
    %v215 = vsel %vm169, %v24, 0
    %v218 = vsel %vm169, %v25, 0
    %v221 = vsel %vm169, %v26, 0
    %v224 = vsel %vm169, %v27, 0
    %v227 = vsel %vm169, %v28, 0
    %v230 = vsel %vm169, %v29, 0
    %v233 = vsel %vm169, %v30, 0
    %v236 = vsel %vm169, %v31, 0
    %v239 = vsel %vm169, %v32, 0
    %v242 = vsel %vm169, %v33, 0
    %v245 = vsel %vm169, %v34, 0
    %v248 = vsel %vm169, %v35, 0
    %v251 = vsel %vm169, %v36, 0
    %v254 = vsel %vm169, %v37, 0
    %v257 = vsel %vm169, %v38, 0
    %v260 = vsel %vm169, %v39, 0
    %v263 = vsel %vm169, %v40, 0
    %v266 = vsel %vm169, %v41, 0
    %v269 = vsel %vm169, %v42, 0
    %v272 = vsel %vm169, %v43, 0
    %v275 = vsel %vm169, %v44, 0
    %v278 = vsel %vm169, %v45, 0
    %v281 = vsel %vm169, %v46, 0
    %v284 = vsel %vm169, %v47, 0
    %v287 = vsel %vm169, %v48, 0
    %v290 = vsel %vm169, %v49, 0
    %v293 = vsel %vm169, %v50, 0
    %v296 = vsel %vm169, %v51, 0
    %v299 = vsel %vm169, %v52, 0
    %v302 = vsel %vm169, %v53, 0
    %v305 = vsel %vm169, %v54, 0
    %v308 = vsel %vm169, %v55, 0
    %v311 = vsel %vm169, %v56, 0
    %v314 = vsel %vm169, %v57, 0
    %v317 = vsel %vm169, %v58, 0
    %v320 = vsel %vm169, %v59, 0
    %v323 = vsel %vm169, %v60, 0
    %v326 = vsel %vm169, %v61, 0
    %v329 = vsel %vm169, %v62, 0
    %v332 = vsel %vm169, %v63, 0
    %v335 = vsel %vm169, %v64, 0
    %v338 = vsel %vm169, %v65, 0
    %v341 = vsel %vm169, %v66, 0
    %v344 = vsel %vm169, %v67, 0
    %v347 = vsel %vm169, %v68, 0
    %v350 = vsel %vm169, %v69, 0
    %v353 = vsel %vm169, %v70, 0
    %v356 = vsel %vm169, %v71, 0
    %v359 = vsel %vm169, %v72, 0
    %v362 = vsel %vm169, %v73, 0
    %v365 = vsel %vm169, %v74, 0
    %v368 = vsel %vm169, %v75, 0
    %v371 = vsel %vm169, %v76, 0
    %v374 = vsel %vm169, %v77, 0
    %v377 = vsel %vm169, %v78, 0
    %v380 = vsel %vm169, %v79, 0
    %v383 = vsel %vm169, %v80, 0
    %v386 = vsel %vm169, %v81, 0
    %v389 = vsel %vm169, %v82, 0
    %v392 = vsel %vm169, %v83, 0
    %v395 = vsel %vm169, %v84, 0
    %v398 = vsel %vm169, %v85, 0
    %v401 = vsel %vm169, %v86, 0
    %v404 = vsel %vm169, %v87, 0
    %v407 = vsel %vm169, %v88, 0
    %v410 = vsel %vm169, %v89, 0
    %v413 = vsel %vm169, %v90, 0
    %v416 = vsel %vm169, %v91, 0
    %v419 = vsel %vm169, %v92, 0
    %v422 = vsel %vm169, %v93, 0
    %v425 = vsel %vm169, %v94, 0
    %v428 = vsel %vm169, %v95, 0
    %v431 = vsel %vm169, %v96, 0
    %v434 = vsel %vm169, %v97, 0
    %v437 = vsel %vm169, %v98, 0
    %v440 = vsel %vm169, %v99, 0
    %v443 = vsel %vm169, %v100, 0
    %v446 = vsel %vm169, %v101, 0
    %v449 = vsel %vm169, %v102, 0
    %v452 = vsel %vm169, %v103, 0
    %v455 = vsel %vm169, %v104, 0
    %v458 = vsel %vm169, %v105, 0
    %v461 = vsel %vm169, %v106, 0
    %v464 = vsel %vm169, %v107, 0
    %v467 = vsel %vm169, %v108, 0
    %v470 = vsel %vm169, %v109, 0
    %v473 = vsel %vm169, %v110, 0
    %v476 = vsel %vm169, %v111, 0
    %v479 = vsel %vm169, %v112, 0
    %v482 = vsel %vm169, %v113, 0
    %v485 = vsel %vm169, %v114, 0
    %v488 = vsel %vm169, %v115, 0
    %v491 = vsel %vm169, %v116, 0
    %v494 = vsel %vm169, %v117, 0
    %v497 = vsel %vm169, %v118, 0
    %v500 = vsel %vm169, %v119, 0
    %v503 = vsel %vm169, %v120, 0
    %v506 = vsel %vm169, %v121, 0
    %v509 = vsel %vm169, %v122, 0
    %v512 = vsel %vm169, %v123, 0
    %v515 = vsel %vm169, %v124, 0
    %v518 = vsel %vm169, %v125, 0
    %v521 = vsel %vm169, %v126, 0
    %v524 = vsel %vm169, %v127, 0
    %v527 = vsel %vm169, %v128, 0
    %v530 = vsel %vm169, %v129, 0
    %v533 = vsel %vm169, %v130, 0
    %v536 = vsel %vm169, %v131, 0
    %v539 = vsel %vm169, %v132, 0
    %v542 = vsel %vm169, %v133, 0
    %v545 = vsel %vm169, %v134, 0
    %v548 = vsel %vm169, %v135, 0
    %v551 = vsel %vm169, %v136, 0
    %v554 = vsel %vm169, %v137, 0
    %v557 = vsel %vm169, %v138, 0
    %v560 = vsel %vm169, %v139, 0
    %562 = vmatprep.subr.mxu0 0.0
    %563 = vmatpush1.xpose.msra.mxu0 %v179
    %564 = vmatprep.subr.mxu0 0.0
    %565 = vmatpush1.xpose.msra.mxu0 %v182
    %566 = vmatprep.subr.mxu0 0.0
    %567 = vmatpush1.xpose.msra.mxu0 %v185
    %568 = vmatprep.subr.mxu0 0.0
    %569 = vmatpush1.xpose.msra.mxu0 %v188
    %570 = vmatprep.subr.mxu0 0.0
    %571 = vmatpush1.xpose.msra.mxu0 %v191
    %572 = vmatprep.subr.mxu0 0.0
    %573 = vmatpush1.xpose.msra.mxu0 %v194
    %574 = vmatprep.subr.mxu0 0.0
    %575 = vmatpush1.xpose.msra.mxu0 %v197
    %576 = vmatprep.subr.mxu0 0.0
    %577 = vmatpush1.xpose.msra.mxu0 %v200
    %578 = vmatprep.subr.mxu0 0.0
    %579 = vmatpush1.xpose.msra.mxu0 %v203
    %580 = vmatprep.subr.mxu0 0.0
    %581 = vmatpush1.xpose.msra.mxu0 %v206
    %582 = vmatprep.subr.mxu0 0.0
    %583 = vmatpush1.xpose.msra.mxu0 %v209
    %584 = vmatprep.subr.mxu0 0.0
    %585 = vmatpush1.xpose.msra.mxu0 %v212
    %586 = vmatprep.subr.mxu0 0.0
    %587 = vmatpush1.xpose.msra.mxu0 %v215
    %588 = vmatprep.subr.mxu0 0.0
    %589 = vmatpush1.xpose.msra.mxu0 %v218
    %590 = vmatprep.subr.mxu0 0.0
    %591 = vmatpush1.xpose.msra.mxu0 %v221
    %592 = vmatprep.subr.mxu0 0.0
    %593 = vmatpush1.xpose.msra.mxu0 %v224
    %594 = vmatprep.subr.mxu0 0.0
    %595 = vmatpush1.xpose.msra.mxu0 %v227
    %596 = vmatprep.subr.mxu0 0.0
    %597 = vmatpush1.xpose.msra.mxu0 %v230
    %598 = vmatprep.subr.mxu0 0.0
    %599 = vmatpush1.xpose.msra.mxu0 %v233
    %600 = vmatprep.subr.mxu0 0.0
    %601 = vmatpush1.xpose.msra.mxu0 %v236
    %602 = vmatprep.subr.mxu0 0.0
    %603 = vmatpush1.xpose.msra.mxu0 %v239
    %604 = vmatprep.subr.mxu0 0.0
    %605 = vmatpush1.xpose.msra.mxu0 %v242
    %606 = vmatprep.subr.mxu0 0.0
    %607 = vmatpush1.xpose.msra.mxu0 %v245
    %608 = vmatprep.subr.mxu0 0.0
    %609 = vmatpush1.xpose.msra.mxu0 %v248
    %610 = vmatprep.subr.mxu0 0.0
    %611 = vmatpush1.xpose.msra.mxu0 %v251
    %612 = vmatprep.subr.mxu0 0.0
    %613 = vmatpush1.xpose.msra.mxu0 %v254
    %614 = vmatprep.subr.mxu0 0.0
    %615 = vmatpush1.xpose.msra.mxu0 %v257
    %616 = vmatprep.subr.mxu0 0.0
    %617 = vmatpush1.xpose.msra.mxu0 %v260
    %618 = vmatprep.subr.mxu0 0.0
    %619 = vmatpush1.xpose.msra.mxu0 %v263
    %620 = vmatprep.subr.mxu0 0.0
    %621 = vmatpush1.xpose.msra.mxu0 %v266
    %622 = vmatprep.subr.mxu0 0.0
    %623 = vmatpush1.xpose.msra.mxu0 %v269
    %624 = vmatprep.subr.mxu0 0.0
    %625 = vmatpush1.xpose.msra.mxu0 %v272
    %626 = vmatprep.mubr.f32.mxu0 0.0
    %627 = vmatmul.mubr.f32.gmra.mrb[0].mxu0 %v170
    %v628 = vpop.f32.mrb[0].mxu0
    %v629 = vadd.f32 %v152, %v628
    %v630 = vpop.f32.mrb[0].mxu0
    %v631 = vadd.f32 %v152, %v630
    %632 = vmatprep.mubr.f32.mxu0 0.0
    %633 = vmatmul.mubr.f32.gmra.mrb[0].mxu0 %v172
    %v634 = vpop.f32.mrb[0].mxu0
    %v635 = vadd.f32 %v157, %v634
    %v636 = vpop.f32.mrb[0].mxu0
    %v637 = vadd.f32 %v157, %v636
    %638 = vmatprep.mubr.f32.mxu0 0.0
    %639 = vmatmul.mubr.f32.gmra.mrb[0].mxu0 %v174
    %v640 = vpop.f32.mrb[0].mxu0
    %v641 = vadd.f32 %v162, %v640
    %v642 = vpop.f32.mrb[0].mxu0
    %v643 = vadd.f32 %v162, %v642
    %644 = vmatprep.mubr.f32.mxu0 0.0
    %645 = vmatmul.mubr.f32.gmra.mrb[0].mxu0 %v176
    %v646 = vpop.f32.mrb[0].mxu0
    %v647 = vadd.f32 %v167, %v646
    %v648 = vpop.f32.mrb[0].mxu0
    %v649 = vadd.f32 %v167, %v648
    %650 = vdwg.mxu0
    %651 = vmatprep.subr.mxu0 0.0
    %652 = vmatpush1.xpose.msra.mxu0 %v275
    %653 = vmatprep.subr.mxu0 0.0
    %654 = vmatpush1.xpose.msra.mxu0 %v278
    %655 = vmatprep.subr.mxu0 0.0
    %656 = vmatpush1.xpose.msra.mxu0 %v281
    %657 = vmatprep.subr.mxu0 0.0
    %658 = vmatpush1.xpose.msra.mxu0 %v284
    %659 = vmatprep.subr.mxu0 0.0
    %660 = vmatpush1.xpose.msra.mxu0 %v287
    %661 = vmatprep.subr.mxu0 0.0
    %662 = vmatpush1.xpose.msra.mxu0 %v290
    %663 = vmatprep.subr.mxu0 0.0
    %664 = vmatpush1.xpose.msra.mxu0 %v293
    %665 = vmatprep.subr.mxu0 0.0
    %666 = vmatpush1.xpose.msra.mxu0 %v296
    %667 = vmatprep.subr.mxu0 0.0
    %668 = vmatpush1.xpose.msra.mxu0 %v299
    %669 = vmatprep.subr.mxu0 0.0
    %670 = vmatpush1.xpose.msra.mxu0 %v302
    %671 = vmatprep.subr.mxu0 0.0
    %672 = vmatpush1.xpose.msra.mxu0 %v305
    %673 = vmatprep.subr.mxu0 0.0
    %674 = vmatpush1.xpose.msra.mxu0 %v308
    %675 = vmatprep.subr.mxu0 0.0
    %676 = vmatpush1.xpose.msra.mxu0 %v311
    %677 = vmatprep.subr.mxu0 0.0
    %678 = vmatpush1.xpose.msra.mxu0 %v314
    %679 = vmatprep.subr.mxu0 0.0
    %680 = vmatpush1.xpose.msra.mxu0 %v317
    %681 = vmatprep.subr.mxu0 0.0
    %682 = vmatpush1.xpose.msra.mxu0 %v320
    %683 = vmatprep.subr.mxu0 0.0
    %684 = vmatpush1.xpose.msra.mxu0 %v323
    %685 = vmatprep.subr.mxu0 0.0
    %686 = vmatpush1.xpose.msra.mxu0 %v326
    %687 = vmatprep.subr.mxu0 0.0
    %688 = vmatpush1.xpose.msra.mxu0 %v329
    %689 = vmatprep.subr.mxu0 0.0
    %690 = vmatpush1.xpose.msra.mxu0 %v332
    %691 = vmatprep.subr.mxu0 0.0
    %692 = vmatpush1.xpose.msra.mxu0 %v335
    %693 = vmatprep.subr.mxu0 0.0
    %694 = vmatpush1.xpose.msra.mxu0 %v338
    %695 = vmatprep.subr.mxu0 0.0
    %696 = vmatpush1.xpose.msra.mxu0 %v341
    %697 = vmatprep.subr.mxu0 0.0
    %698 = vmatpush1.xpose.msra.mxu0 %v344
    %699 = vmatprep.subr.mxu0 0.0
    %700 = vmatpush1.xpose.msra.mxu0 %v347
    %701 = vmatprep.subr.mxu0 0.0
    %702 = vmatpush1.xpose.msra.mxu0 %v350
    %703 = vmatprep.subr.mxu0 0.0
    %704 = vmatpush1.xpose.msra.mxu0 %v353
    %705 = vmatprep.subr.mxu0 0.0
    %706 = vmatpush1.xpose.msra.mxu0 %v356
    %707 = vmatprep.subr.mxu0 0.0
    %708 = vmatpush1.xpose.msra.mxu0 %v359
    %709 = vmatprep.subr.mxu0 0.0
    %710 = vmatpush1.xpose.msra.mxu0 %v362
    %711 = vmatprep.subr.mxu0 0.0
    %712 = vmatpush1.xpose.msra.mxu0 %v365
    %713 = vmatprep.subr.mxu0 0.0
    %714 = vmatpush1.xpose.msra.mxu0 %v368
    %715 = vmatprep.mubr.f32.mxu0 0.0
    %716 = vmatmul.mubr.f32.gmra.mrb[0].mxu0 %v170
    %v717 = vpop.f32.mrb[0].mxu0
    %v718 = vadd.f32 %v152, %v717
    %v719 = vpop.f32.mrb[0].mxu0
    %v720 = vadd.f32 %v152, %v719
    %721 = vmatprep.mubr.f32.mxu0 0.0
    %722 = vmatmul.mubr.f32.gmra.mrb[0].mxu0 %v172
    %v723 = vpop.f32.mrb[0].mxu0
    %v724 = vadd.f32 %v157, %v723
    %v725 = vpop.f32.mrb[0].mxu0
    %v726 = vadd.f32 %v157, %v725
    %727 = vmatprep.mubr.f32.mxu0 0.0
    %728 = vmatmul.mubr.f32.gmra.mrb[0].mxu0 %v174
    %v729 = vpop.f32.mrb[0].mxu0
    %v730 = vadd.f32 %v162, %v729
    %v731 = vpop.f32.mrb[0].mxu0
    %v732 = vadd.f32 %v162, %v731
    %733 = vmatprep.mubr.f32.mxu0 0.0
    %734 = vmatmul.mubr.f32.gmra.mrb[0].mxu0 %v176
    %v735 = vpop.f32.mrb[0].mxu0
    %v736 = vadd.f32 %v167, %v735
    %v737 = vpop.f32.mrb[0].mxu0
    %v738 = vadd.f32 %v167, %v737
    %739 = vdwg.mxu0
    %740 = vmatprep.subr.mxu0 0.0
    %741 = vmatpush1.xpose.msra.mxu0 %v371
    %742 = vmatprep.subr.mxu0 0.0
    %743 = vmatpush1.xpose.msra.mxu0 %v374
    %744 = vmatprep.subr.mxu0 0.0
    %745 = vmatpush1.xpose.msra.mxu0 %v377
    %746 = vmatprep.subr.mxu0 0.0
    %747 = vmatpush1.xpose.msra.mxu0 %v380
    %748 = vmatprep.subr.mxu0 0.0
    %749 = vmatpush1.xpose.msra.mxu0 %v383
    %750 = vmatprep.subr.mxu0 0.0
    %751 = vmatpush1.xpose.msra.mxu0 %v386
    %752 = vmatprep.subr.mxu0 0.0
    %753 = vmatpush1.xpose.msra.mxu0 %v389
    %754 = vmatprep.subr.mxu0 0.0
    %755 = vmatpush1.xpose.msra.mxu0 %v392
    %756 = vmatprep.subr.mxu0 0.0
    %757 = vmatpush1.xpose.msra.mxu0 %v395
    %758 = vmatprep.subr.mxu0 0.0
    %759 = vmatpush1.xpose.msra.mxu0 %v398
    %760 = vmatprep.subr.mxu0 0.0
    %761 = vmatpush1.xpose.msra.mxu0 %v401
    %762 = vmatprep.subr.mxu0 0.0
    %763 = vmatpush1.xpose.msra.mxu0 %v404
    %764 = vmatprep.subr.mxu0 0.0
    %765 = vmatpush1.xpose.msra.mxu0 %v407
    %766 = vmatprep.subr.mxu0 0.0
    %767 = vmatpush1.xpose.msra.mxu0 %v410
    %768 = vmatprep.subr.mxu0 0.0
    %769 = vmatpush1.xpose.msra.mxu0 %v413
    %770 = vmatprep.subr.mxu0 0.0
    %771 = vmatpush1.xpose.msra.mxu0 %v416
    %772 = vmatprep.subr.mxu0 0.0
    %773 = vmatpush1.xpose.msra.mxu0 %v419
    %774 = vmatprep.subr.mxu0 0.0
    %775 = vmatpush1.xpose.msra.mxu0 %v422
    %776 = vmatprep.subr.mxu0 0.0
    %777 = vmatpush1.xpose.msra.mxu0 %v425
    %778 = vmatprep.subr.mxu0 0.0
    %779 = vmatpush1.xpose.msra.mxu0 %v428
    %780 = vmatprep.subr.mxu0 0.0
    %781 = vmatpush1.xpose.msra.mxu0 %v431
    %782 = vmatprep.subr.mxu0 0.0
    %783 = vmatpush1.xpose.msra.mxu0 %v434
    %784 = vmatprep.subr.mxu0 0.0
    %785 = vmatpush1.xpose.msra.mxu0 %v437
    %786 = vmatprep.subr.mxu0 0.0
    %787 = vmatpush1.xpose.msra.mxu0 %v440
    %788 = vmatprep.subr.mxu0 0.0
    %789 = vmatpush1.xpose.msra.mxu0 %v443
    %790 = vmatprep.subr.mxu0 0.0
    %791 = vmatpush1.xpose.msra.mxu0 %v446
    %792 = vmatprep.subr.mxu0 0.0
    %793 = vmatpush1.xpose.msra.mxu0 %v449
    %794 = vmatprep.subr.mxu0 0.0
    %795 = vmatpush1.xpose.msra.mxu0 %v452
    %796 = vmatprep.subr.mxu0 0.0
    %797 = vmatpush1.xpose.msra.mxu0 %v455
    %798 = vmatprep.subr.mxu0 0.0
    %799 = vmatpush1.xpose.msra.mxu0 %v458
    %800 = vmatprep.subr.mxu0 0.0
    %801 = vmatpush1.xpose.msra.mxu0 %v461
    %802 = vmatprep.subr.mxu0 0.0
    %803 = vmatpush1.xpose.msra.mxu0 %v464
    %804 = vmatprep.mubr.f32.mxu0 0.0
    %805 = vmatmul.mubr.f32.gmra.mrb[0].mxu0 %v170
    %v806 = vpop.f32.mrb[0].mxu0
    %v807 = vadd.f32 %v152, %v806
    %v808 = vpop.f32.mrb[0].mxu0
    %v809 = vadd.f32 %v152, %v808
    %810 = vmatprep.mubr.f32.mxu0 0.0
    %811 = vmatmul.mubr.f32.gmra.mrb[0].mxu0 %v172
    %v812 = vpop.f32.mrb[0].mxu0
    %v813 = vadd.f32 %v157, %v812
    %v814 = vpop.f32.mrb[0].mxu0
    %v815 = vadd.f32 %v157, %v814
    %816 = vmatprep.mubr.f32.mxu0 0.0
    %817 = vmatmul.mubr.f32.gmra.mrb[0].mxu0 %v174
    %v818 = vpop.f32.mrb[0].mxu0
    %v819 = vadd.f32 %v162, %v818
    %v820 = vpop.f32.mrb[0].mxu0
    %v821 = vadd.f32 %v162, %v820
    %822 = vmatprep.mubr.f32.mxu0 0.0
    %823 = vmatmul.mubr.f32.gmra.mrb[0].mxu0 %v176
    %v824 = vpop.f32.mrb[0].mxu0
    %v825 = vadd.f32 %v167, %v824
    %v826 = vpop.f32.mrb[0].mxu0
    %v827 = vadd.f32 %v167, %v826
    %828 = vdwg.mxu0
    %829 = vmatprep.subr.mxu0 0.0
    %830 = vmatpush1.xpose.msra.mxu0 %v467
    %831 = vmatprep.subr.mxu0 0.0
    %832 = vmatpush1.xpose.msra.mxu0 %v470
    %833 = vmatprep.subr.mxu0 0.0
    %834 = vmatpush1.xpose.msra.mxu0 %v473
    %835 = vmatprep.subr.mxu0 0.0
    %836 = vmatpush1.xpose.msra.mxu0 %v476
    %837 = vmatprep.subr.mxu0 0.0
    %838 = vmatpush1.xpose.msra.mxu0 %v479
    %839 = vmatprep.subr.mxu0 0.0
    %840 = vmatpush1.xpose.msra.mxu0 %v482
    %841 = vmatprep.subr.mxu0 0.0
    %842 = vmatpush1.xpose.msra.mxu0 %v485
    %843 = vmatprep.subr.mxu0 0.0
    %844 = vmatpush1.xpose.msra.mxu0 %v488
    %845 = vmatprep.subr.mxu0 0.0
    %846 = vmatpush1.xpose.msra.mxu0 %v491
    %847 = vmatprep.subr.mxu0 0.0
    %848 = vmatpush1.xpose.msra.mxu0 %v494
    %849 = vmatprep.subr.mxu0 0.0
    %850 = vmatpush1.xpose.msra.mxu0 %v497
    %851 = vmatprep.subr.mxu0 0.0
    %852 = vmatpush1.xpose.msra.mxu0 %v500
    %853 = vmatprep.subr.mxu0 0.0
    %854 = vmatpush1.xpose.msra.mxu0 %v503
    %855 = vmatprep.subr.mxu0 0.0
    %856 = vmatpush1.xpose.msra.mxu0 %v506
    %857 = vmatprep.subr.mxu0 0.0
    %858 = vmatpush1.xpose.msra.mxu0 %v509
    %859 = vmatprep.subr.mxu0 0.0
    %860 = vmatpush1.xpose.msra.mxu0 %v512
    %861 = vmatprep.subr.mxu0 0.0
    %862 = vmatpush1.xpose.msra.mxu0 %v515
    %863 = vmatprep.subr.mxu0 0.0
    %864 = vmatpush1.xpose.msra.mxu0 %v518
    %865 = vmatprep.subr.mxu0 0.0
    %866 = vmatpush1.xpose.msra.mxu0 %v521
    %867 = vmatprep.subr.mxu0 0.0
    %868 = vmatpush1.xpose.msra.mxu0 %v524
    %869 = vmatprep.subr.mxu0 0.0
    %870 = vmatpush1.xpose.msra.mxu0 %v527
    %871 = vmatprep.subr.mxu0 0.0
    %872 = vmatpush1.xpose.msra.mxu0 %v530
    %873 = vmatprep.subr.mxu0 0.0
    %874 = vmatpush1.xpose.msra.mxu0 %v533
    %875 = vmatprep.subr.mxu0 0.0
    %876 = vmatpush1.xpose.msra.mxu0 %v536
    %877 = vmatprep.subr.mxu0 0.0
    %878 = vmatpush1.xpose.msra.mxu0 %v539
    %879 = vmatprep.subr.mxu0 0.0
    %880 = vmatpush1.xpose.msra.mxu0 %v542
    %881 = vmatprep.subr.mxu0 0.0
    %882 = vmatpush1.xpose.msra.mxu0 %v545
    %883 = vmatprep.subr.mxu0 0.0
    %884 = vmatpush1.xpose.msra.mxu0 %v548
    %885 = vmatprep.subr.mxu0 0.0
    %886 = vmatpush1.xpose.msra.mxu0 %v551
    %887 = vmatprep.subr.mxu0 0.0
    %888 = vmatpush1.xpose.msra.mxu0 %v554
    %889 = vmatprep.subr.mxu0 0.0
    %890 = vmatpush1.xpose.msra.mxu0 %v557
    %891 = vmatprep.subr.mxu0 0.0
    %892 = vmatpush1.xpose.msra.mxu0 %v560
    %893 = vmatprep.mubr.f32.mxu0 0.0
    %894 = vmatmul.mubr.f32.gmra.mrb[0].mxu0 %v170
    %v895 = vpop.f32.mrb[0].mxu0
    %v896 = vadd.f32 %v152, %v895
    %v897 = vpop.f32.mrb[0].mxu0
    %v898 = vadd.f32 %v152, %v897
    %899 = vmatprep.mubr.f32.mxu0 0.0
    %900 = vmatmul.mubr.f32.gmra.mrb[0].mxu0 %v172
    %v901 = vpop.f32.mrb[0].mxu0
    %v902 = vadd.f32 %v157, %v901
    %v903 = vpop.f32.mrb[0].mxu0
    %v904 = vadd.f32 %v157, %v903
    %905 = vmatprep.mubr.f32.mxu0 0.0
    %906 = vmatmul.mubr.f32.gmra.mrb[0].mxu0 %v174
    %v907 = vpop.f32.mrb[0].mxu0
    %v908 = vadd.f32 %v162, %v907
    %v909 = vpop.f32.mrb[0].mxu0
    %v910 = vadd.f32 %v162, %v909
    %911 = vmatprep.mubr.f32.mxu0 0.0
    %912 = vmatmul.mubr.f32.gmra.mrb[0].mxu0 %v176
    %v913 = vpop.f32.mrb[0].mxu0
    %v914 = vadd.f32 %v167, %v913
    %v915 = vpop.f32.mrb[0].mxu0
    %v916 = vadd.f32 %v167, %v915
    %917 = vdwg.mxu0
    %v918 = vmax.f32 %v629, 0.0
    %v919 = vmax.f32 %v631, 0.0
    %v920 = vmax.f32 %v718, 0.0
    %v921 = vmax.f32 %v720, 0.0
    %v922 = vmax.f32 %v807, 0.0
    %v923 = vmax.f32 %v809, 0.0
    %v924 = vmax.f32 %v896, 0.0
    %v925 = vmax.f32 %v898, 0.0
    %v926 = vmax.f32 %v635, 0.0
    %v927 = vmax.f32 %v637, 0.0
    %v928 = vmax.f32 %v724, 0.0
    %v929 = vmax.f32 %v726, 0.0
    %v930 = vmax.f32 %v813, 0.0
    %v931 = vmax.f32 %v815, 0.0
    %v932 = vmax.f32 %v902, 0.0
    %v933 = vmax.f32 %v904, 0.0
    %v934 = vmax.f32 %v641, 0.0
    %v935 = vmax.f32 %v643, 0.0
    %v936 = vmax.f32 %v730, 0.0
    %v937 = vmax.f32 %v732, 0.0
    %v938 = vmax.f32 %v819, 0.0
    %v939 = vmax.f32 %v821, 0.0
    %v940 = vmax.f32 %v908, 0.0
    %v941 = vmax.f32 %v910, 0.0
    %v942 = vmax.f32 %v647, 0.0
    %v943 = vmax.f32 %v649, 0.0
    %v944 = vmax.f32 %v736, 0.0
    %v945 = vmax.f32 %v738, 0.0
    %v946 = vmax.f32 %v825, 0.0
    %v947 = vmax.f32 %v827, 0.0
    %v948 = vmax.f32 %v914, 0.0
    %v949 = vmax.f32 %v916, 0.0
    %951 = vset.pattern.permute.xlu0 32
    %952 = vperm.xlu0 %951, %v144
    %v953 = vpop.permute.xlu0 %952
    %956 = vset.pattern.permute.xlu0 32
    %957 = vperm.xlu0 %956, %v145
    %v958 = vpop.permute.xlu0 %957
    %961 = vset.pattern.permute.xlu0 32
    %962 = vperm.xlu0 %961, %v146
    %v963 = vpop.permute.xlu0 %962
    %966 = vset.pattern.permute.xlu0 32
    %967 = vperm.xlu0 %966, %v147
    %v968 = vpop.permute.xlu0 %967
    %vm970 = vcmask 261120
    %v971 = vsel %vm970, %v144, 0
    %v973 = vsel %vm970, %v145, 0
    %v975 = vsel %vm970, %v146, 0
    %v977 = vsel %vm970, %v147, 0
    %979 = vmatprep.subr.mxu0 %v919
    %980 = vmatpush1.msra.mxu0 %v918
    %981 = vmatprep.subr.mxu0 %v927
    %982 = vmatpush1.msra.mxu0 %v926
    %983 = vmatprep.subr.mxu0 %v935
    %984 = vmatpush1.msra.mxu0 %v934
    %985 = vmatprep.subr.mxu0 %v943
    %986 = vmatpush1.msra.mxu0 %v942
    %987 = vmatprep.subr.mxu0 0.0
    %988 = vmatpush1.msra.mxu0 0.0
    %989 = vmatprep.subr.mxu0 0.0
    %990 = vmatpush1.msra.mxu0 0.0
    %991 = vmatprep.subr.mxu0 0.0
    %992 = vmatpush1.msra.mxu0 0.0
    %993 = vmatprep.subr.mxu0 0.0
    %994 = vmatpush1.msra.mxu0 0.0
    %995 = vmatprep.subr.mxu0 0.0
    %996 = vmatpush1.msra.mxu0 0.0
    %997 = vmatprep.subr.mxu0 0.0
    %998 = vmatpush1.msra.mxu0 0.0
    %999 = vmatprep.subr.mxu0 0.0
    %1000 = vmatpush1.msra.mxu0 0.0
    %1001 = vmatprep.subr.mxu0 0.0
    %1002 = vmatpush1.msra.mxu0 0.0
    %1003 = vmatprep.subr.mxu0 0.0
    %1004 = vmatpush1.msra.mxu0 0.0
    %1005 = vmatprep.subr.mxu0 0.0
    %1006 = vmatpush1.msra.mxu0 0.0
    %1007 = vmatprep.subr.mxu0 0.0
    %1008 = vmatpush1.msra.mxu0 0.0
    %1009 = vmatprep.subr.mxu0 0.0
    %1010 = vmatpush1.msra.mxu0 0.0
    %1011 = vmatprep.subr.mxu0 0.0
    %1012 = vmatpush1.msra.mxu0 0.0
    %1013 = vmatprep.subr.mxu0 0.0
    %1014 = vmatpush1.msra.mxu0 0.0
    %1015 = vmatprep.subr.mxu0 0.0
    %1016 = vmatpush1.msra.mxu0 0.0
    %1017 = vmatprep.subr.mxu0 0.0
    %1018 = vmatpush1.msra.mxu0 0.0
    %1019 = vmatprep.subr.mxu0 0.0
    %1020 = vmatpush1.msra.mxu0 0.0
    %1021 = vmatprep.subr.mxu0 0.0
    %1022 = vmatpush1.msra.mxu0 0.0
    %1023 = vmatprep.subr.mxu0 0.0
    %1024 = vmatpush1.msra.mxu0 0.0
    %1025 = vmatprep.subr.mxu0 0.0
    %1026 = vmatpush1.msra.mxu0 0.0
    %1027 = vmatprep.subr.mxu0 0.0
    %1028 = vmatpush1.msra.mxu0 0.0
    %1029 = vmatprep.subr.mxu0 0.0
    %1030 = vmatpush1.msra.mxu0 0.0
    %1031 = vmatprep.subr.mxu0 0.0
    %1032 = vmatpush1.msra.mxu0 0.0
    %1033 = vmatprep.subr.mxu0 0.0
    %1034 = vmatpush1.msra.mxu0 0.0
    %1035 = vmatprep.subr.mxu0 0.0
    %1036 = vmatpush1.msra.mxu0 0.0
    %1037 = vmatprep.subr.mxu0 0.0
    %1038 = vmatpush1.msra.mxu0 0.0
    %1039 = vmatprep.subr.mxu0 0.0
    %1040 = vmatpush1.msra.mxu0 0.0
    %1041 = vmatprep.subr.mxu0 0.0
    %1042 = vmatpush1.msra.mxu0 0.0
    %1043 = vmatprep.mubr.f32.mxu0 0.0
    %1044 = vmatmul.mubr.f32.gmra.mrb[0].mxu0 %v971
    %v1045 = vpop.f32.mrb[0].mxu0
    %v1046 = vadd.f32 %v953, %v1045
    %v1047 = vpop.f32.mrb[0].mxu0
    %v1048 = vadd.f32 %v953, %v1047
    %1049 = vmatprep.mubr.f32.mxu0 0.0
    %1050 = vmatmul.mubr.f32.gmra.mrb[0].mxu0 %v973
    %v1051 = vpop.f32.mrb[0].mxu0
    %v1052 = vadd.f32 %v958, %v1051
    %v1053 = vpop.f32.mrb[0].mxu0
    %v1054 = vadd.f32 %v958, %v1053
    %1055 = vmatprep.mubr.f32.mxu0 0.0
    %1056 = vmatmul.mubr.f32.gmra.mrb[0].mxu0 %v975
    %v1057 = vpop.f32.mrb[0].mxu0
    %v1058 = vadd.f32 %v963, %v1057
    %v1059 = vpop.f32.mrb[0].mxu0
    %v1060 = vadd.f32 %v963, %v1059
    %1061 = vmatprep.mubr.f32.mxu0 0.0
    %1062 = vmatmul.mubr.f32.gmra.mrb[0].mxu0 %v977
    %v1063 = vpop.f32.mrb[0].mxu0
    %v1064 = vadd.f32 %v968, %v1063
    %v1065 = vpop.f32.mrb[0].mxu0
    %v1066 = vadd.f32 %v968, %v1065
    %1067 = vdwg.mxu0
    %1068 = vmatprep.subr.mxu0 %v921
    %1069 = vmatpush1.msra.mxu0 %v920
    %1070 = vmatprep.subr.mxu0 %v929
    %1071 = vmatpush1.msra.mxu0 %v928
    %1072 = vmatprep.subr.mxu0 %v937
    %1073 = vmatpush1.msra.mxu0 %v936
    %1074 = vmatprep.subr.mxu0 %v945
    %1075 = vmatpush1.msra.mxu0 %v944
    %1076 = vmatprep.subr.mxu0 0.0
    %1077 = vmatpush1.msra.mxu0 0.0
    %1078 = vmatprep.subr.mxu0 0.0
    %1079 = vmatpush1.msra.mxu0 0.0
    %1080 = vmatprep.subr.mxu0 0.0
    %1081 = vmatpush1.msra.mxu0 0.0
    %1082 = vmatprep.subr.mxu0 0.0
    %1083 = vmatpush1.msra.mxu0 0.0
    %1084 = vmatprep.subr.mxu0 0.0
    %1085 = vmatpush1.msra.mxu0 0.0
    %1086 = vmatprep.subr.mxu0 0.0
    %1087 = vmatpush1.msra.mxu0 0.0
    %1088 = vmatprep.subr.mxu0 0.0
    %1089 = vmatpush1.msra.mxu0 0.0
    %1090 = vmatprep.subr.mxu0 0.0
    %1091 = vmatpush1.msra.mxu0 0.0
    %1092 = vmatprep.subr.mxu0 0.0
    %1093 = vmatpush1.msra.mxu0 0.0
    %1094 = vmatprep.subr.mxu0 0.0
    %1095 = vmatpush1.msra.mxu0 0.0
    %1096 = vmatprep.subr.mxu0 0.0
    %1097 = vmatpush1.msra.mxu0 0.0
    %1098 = vmatprep.subr.mxu0 0.0
    %1099 = vmatpush1.msra.mxu0 0.0
    %1100 = vmatprep.subr.mxu0 0.0
    %1101 = vmatpush1.msra.mxu0 0.0
    %1102 = vmatprep.subr.mxu0 0.0
    %1103 = vmatpush1.msra.mxu0 0.0
    %1104 = vmatprep.subr.mxu0 0.0
    %1105 = vmatpush1.msra.mxu0 0.0
    %1106 = vmatprep.subr.mxu0 0.0
    %1107 = vmatpush1.msra.mxu0 0.0
    %1108 = vmatprep.subr.mxu0 0.0
    %1109 = vmatpush1.msra.mxu0 0.0
    %1110 = vmatprep.subr.mxu0 0.0
    %1111 = vmatpush1.msra.mxu0 0.0
    %1112 = vmatprep.subr.mxu0 0.0
    %1113 = vmatpush1.msra.mxu0 0.0
    %1114 = vmatprep.subr.mxu0 0.0
    %1115 = vmatpush1.msra.mxu0 0.0
    %1116 = vmatprep.subr.mxu0 0.0
    %1117 = vmatpush1.msra.mxu0 0.0
    %1118 = vmatprep.subr.mxu0 0.0
    %1119 = vmatpush1.msra.mxu0 0.0
    %1120 = vmatprep.subr.mxu0 0.0
    %1121 = vmatpush1.msra.mxu0 0.0
    %1122 = vmatprep.subr.mxu0 0.0
    %1123 = vmatpush1.msra.mxu0 0.0
    %1124 = vmatprep.subr.mxu0 0.0
    %1125 = vmatpush1.msra.mxu0 0.0
    %1126 = vmatprep.subr.mxu0 0.0
    %1127 = vmatpush1.msra.mxu0 0.0
    %1128 = vmatprep.subr.mxu0 0.0
    %1129 = vmatpush1.msra.mxu0 0.0
    %1130 = vmatprep.subr.mxu0 0.0
    %1131 = vmatpush1.msra.mxu0 0.0
    %1132 = vmatprep.mubr.f32.mxu0 0.0
    %1133 = vmatmul.mubr.f32.gmra.mrb[0].mxu0 %v971
    %v1134 = vpop.f32.mrb[0].mxu0
    %v1135 = vadd.f32 %v953, %v1134
    %v1136 = vpop.f32.mrb[0].mxu0
    %v1137 = vadd.f32 %v953, %v1136
    %1138 = vmatprep.mubr.f32.mxu0 0.0
    %1139 = vmatmul.mubr.f32.gmra.mrb[0].mxu0 %v973
    %v1140 = vpop.f32.mrb[0].mxu0
    %v1141 = vadd.f32 %v958, %v1140
    %v1142 = vpop.f32.mrb[0].mxu0
    %v1143 = vadd.f32 %v958, %v1142
    %1144 = vmatprep.mubr.f32.mxu0 0.0
    %1145 = vmatmul.mubr.f32.gmra.mrb[0].mxu0 %v975
    %v1146 = vpop.f32.mrb[0].mxu0
    %v1147 = vadd.f32 %v963, %v1146
    %v1148 = vpop.f32.mrb[0].mxu0
    %v1149 = vadd.f32 %v963, %v1148
    %1150 = vmatprep.mubr.f32.mxu0 0.0
    %1151 = vmatmul.mubr.f32.gmra.mrb[0].mxu0 %v977
    %v1152 = vpop.f32.mrb[0].mxu0
    %v1153 = vadd.f32 %v968, %v1152
    %v1154 = vpop.f32.mrb[0].mxu0
    %v1155 = vadd.f32 %v968, %v1154
    %1156 = vdwg.mxu0
    %1157 = vmatprep.subr.mxu0 %v923
    %1158 = vmatpush1.msra.mxu0 %v922
    %1159 = vmatprep.subr.mxu0 %v931
    %1160 = vmatpush1.msra.mxu0 %v930
    %1161 = vmatprep.subr.mxu0 %v939
    %1162 = vmatpush1.msra.mxu0 %v938
    %1163 = vmatprep.subr.mxu0 %v947
    %1164 = vmatpush1.msra.mxu0 %v946
    %1165 = vmatprep.subr.mxu0 0.0
    %1166 = vmatpush1.msra.mxu0 0.0
    %1167 = vmatprep.subr.mxu0 0.0
    %1168 = vmatpush1.msra.mxu0 0.0
    %1169 = vmatprep.subr.mxu0 0.0
    %1170 = vmatpush1.msra.mxu0 0.0
    %1171 = vmatprep.subr.mxu0 0.0
    %1172 = vmatpush1.msra.mxu0 0.0
    %1173 = vmatprep.subr.mxu0 0.0
    %1174 = vmatpush1.msra.mxu0 0.0
    %1175 = vmatprep.subr.mxu0 0.0
    %1176 = vmatpush1.msra.mxu0 0.0
    %1177 = vmatprep.subr.mxu0 0.0
    %1178 = vmatpush1.msra.mxu0 0.0
    %1179 = vmatprep.subr.mxu0 0.0
    %1180 = vmatpush1.msra.mxu0 0.0
    %1181 = vmatprep.subr.mxu0 0.0
    %1182 = vmatpush1.msra.mxu0 0.0
    %1183 = vmatprep.subr.mxu0 0.0
    %1184 = vmatpush1.msra.mxu0 0.0
    %1185 = vmatprep.subr.mxu0 0.0
    %1186 = vmatpush1.msra.mxu0 0.0
    %1187 = vmatprep.subr.mxu0 0.0
    %1188 = vmatpush1.msra.mxu0 0.0
    %1189 = vmatprep.subr.mxu0 0.0
    %1190 = vmatpush1.msra.mxu0 0.0
    %1191 = vmatprep.subr.mxu0 0.0
    %1192 = vmatpush1.msra.mxu0 0.0
    %1193 = vmatprep.subr.mxu0 0.0
    %1194 = vmatpush1.msra.mxu0 0.0
    %1195 = vmatprep.subr.mxu0 0.0
    %1196 = vmatpush1.msra.mxu0 0.0
    %1197 = vmatprep.subr.mxu0 0.0
    %1198 = vmatpush1.msra.mxu0 0.0
    %1199 = vmatprep.subr.mxu0 0.0
    %1200 = vmatpush1.msra.mxu0 0.0
    %1201 = vmatprep.subr.mxu0 0.0
    %1202 = vmatpush1.msra.mxu0 0.0
    %1203 = vmatprep.subr.mxu0 0.0
    %1204 = vmatpush1.msra.mxu0 0.0
    %1205 = vmatprep.subr.mxu0 0.0
    %1206 = vmatpush1.msra.mxu0 0.0
    %1207 = vmatprep.subr.mxu0 0.0
    %1208 = vmatpush1.msra.mxu0 0.0
    %1209 = vmatprep.subr.mxu0 0.0
    %1210 = vmatpush1.msra.mxu0 0.0
    %1211 = vmatprep.subr.mxu0 0.0
    %1212 = vmatpush1.msra.mxu0 0.0
    %1213 = vmatprep.subr.mxu0 0.0
    %1214 = vmatpush1.msra.mxu0 0.0
    %1215 = vmatprep.subr.mxu0 0.0
    %1216 = vmatpush1.msra.mxu0 0.0
    %1217 = vmatprep.subr.mxu0 0.0
    %1218 = vmatpush1.msra.mxu0 0.0
    %1219 = vmatprep.subr.mxu0 0.0
    %1220 = vmatpush1.msra.mxu0 0.0
    %1221 = vmatprep.mubr.f32.mxu0 0.0
    %1222 = vmatmul.mubr.f32.gmra.mrb[0].mxu0 %v971
    %v1223 = vpop.f32.mrb[0].mxu0
    %v1224 = vadd.f32 %v953, %v1223
    %v1225 = vpop.f32.mrb[0].mxu0
    %v1226 = vadd.f32 %v953, %v1225
    %1227 = vmatprep.mubr.f32.mxu0 0.0
    %1228 = vmatmul.mubr.f32.gmra.mrb[0].mxu0 %v973
    %v1229 = vpop.f32.mrb[0].mxu0
    %v1230 = vadd.f32 %v958, %v1229
    %v1231 = vpop.f32.mrb[0].mxu0
    %v1232 = vadd.f32 %v958, %v1231
    %1233 = vmatprep.mubr.f32.mxu0 0.0
    %1234 = vmatmul.mubr.f32.gmra.mrb[0].mxu0 %v975
    %v1235 = vpop.f32.mrb[0].mxu0
    %v1236 = vadd.f32 %v963, %v1235
    %v1237 = vpop.f32.mrb[0].mxu0
    %v1238 = vadd.f32 %v963, %v1237
    %1239 = vmatprep.mubr.f32.mxu0 0.0
    %1240 = vmatmul.mubr.f32.gmra.mrb[0].mxu0 %v977
    %v1241 = vpop.f32.mrb[0].mxu0
    %v1242 = vadd.f32 %v968, %v1241
    %v1243 = vpop.f32.mrb[0].mxu0
    %v1244 = vadd.f32 %v968, %v1243
    %1245 = vdwg.mxu0
    %1246 = vmatprep.subr.mxu0 %v925
    %1247 = vmatpush1.msra.mxu0 %v924
    %1248 = vmatprep.subr.mxu0 %v933
    %1249 = vmatpush1.msra.mxu0 %v932
    %1250 = vmatprep.subr.mxu0 %v941
    %1251 = vmatpush1.msra.mxu0 %v940
    %1252 = vmatprep.subr.mxu0 %v949
    %1253 = vmatpush1.msra.mxu0 %v948
    %1254 = vmatprep.subr.mxu0 0.0
    %1255 = vmatpush1.msra.mxu0 0.0
    %1256 = vmatprep.subr.mxu0 0.0
    %1257 = vmatpush1.msra.mxu0 0.0
    %1258 = vmatprep.subr.mxu0 0.0
    %1259 = vmatpush1.msra.mxu0 0.0
    %1260 = vmatprep.subr.mxu0 0.0
    %1261 = vmatpush1.msra.mxu0 0.0
    %1262 = vmatprep.subr.mxu0 0.0
    %1263 = vmatpush1.msra.mxu0 0.0
    %1264 = vmatprep.subr.mxu0 0.0
    %1265 = vmatpush1.msra.mxu0 0.0
    %1266 = vmatprep.subr.mxu0 0.0
    %1267 = vmatpush1.msra.mxu0 0.0
    %1268 = vmatprep.subr.mxu0 0.0
    %1269 = vmatpush1.msra.mxu0 0.0
    %1270 = vmatprep.subr.mxu0 0.0
    %1271 = vmatpush1.msra.mxu0 0.0
    %1272 = vmatprep.subr.mxu0 0.0
    %1273 = vmatpush1.msra.mxu0 0.0
    %1274 = vmatprep.subr.mxu0 0.0
    %1275 = vmatpush1.msra.mxu0 0.0
    %1276 = vmatprep.subr.mxu0 0.0
    %1277 = vmatpush1.msra.mxu0 0.0
    %1278 = vmatprep.subr.mxu0 0.0
    %1279 = vmatpush1.msra.mxu0 0.0
    %1280 = vmatprep.subr.mxu0 0.0
    %1281 = vmatpush1.msra.mxu0 0.0
    %1282 = vmatprep.subr.mxu0 0.0
    %1283 = vmatpush1.msra.mxu0 0.0
    %1284 = vmatprep.subr.mxu0 0.0
    %1285 = vmatpush1.msra.mxu0 0.0
    %1286 = vmatprep.subr.mxu0 0.0
    %1287 = vmatpush1.msra.mxu0 0.0
    %1288 = vmatprep.subr.mxu0 0.0
    %1289 = vmatpush1.msra.mxu0 0.0
    %1290 = vmatprep.subr.mxu0 0.0
    %1291 = vmatpush1.msra.mxu0 0.0
    %1292 = vmatprep.subr.mxu0 0.0
    %1293 = vmatpush1.msra.mxu0 0.0
    %1294 = vmatprep.subr.mxu0 0.0
    %1295 = vmatpush1.msra.mxu0 0.0
    %1296 = vmatprep.subr.mxu0 0.0
    %1297 = vmatpush1.msra.mxu0 0.0
    %1298 = vmatprep.subr.mxu0 0.0
    %1299 = vmatpush1.msra.mxu0 0.0
    %1300 = vmatprep.subr.mxu0 0.0
    %1301 = vmatpush1.msra.mxu0 0.0
    %1302 = vmatprep.subr.mxu0 0.0
    %1303 = vmatpush1.msra.mxu0 0.0
    %1304 = vmatprep.subr.mxu0 0.0
    %1305 = vmatpush1.msra.mxu0 0.0
    %1306 = vmatprep.subr.mxu0 0.0
    %1307 = vmatpush1.msra.mxu0 0.0
    %1308 = vmatprep.subr.mxu0 0.0
    %1309 = vmatpush1.msra.mxu0 0.0
    %1310 = vmatprep.mubr.f32.mxu0 0.0
    %1311 = vmatmul.mubr.f32.gmra.mrb[0].mxu0 %v971
    %v1312 = vpop.f32.mrb[0].mxu0
    %v1313 = vadd.f32 %v953, %v1312
    %v1314 = vpop.f32.mrb[0].mxu0
    %v1315 = vadd.f32 %v953, %v1314
    %1316 = vmatprep.mubr.f32.mxu0 0.0
    %1317 = vmatmul.mubr.f32.gmra.mrb[0].mxu0 %v973
    %v1318 = vpop.f32.mrb[0].mxu0
    %v1319 = vadd.f32 %v958, %v1318
    %v1320 = vpop.f32.mrb[0].mxu0
    %v1321 = vadd.f32 %v958, %v1320
    %1322 = vmatprep.mubr.f32.mxu0 0.0
    %1323 = vmatmul.mubr.f32.gmra.mrb[0].mxu0 %v975
    %v1324 = vpop.f32.mrb[0].mxu0
    %v1325 = vadd.f32 %v963, %v1324
    %v1326 = vpop.f32.mrb[0].mxu0
    %v1327 = vadd.f32 %v963, %v1326
    %1328 = vmatprep.mubr.f32.mxu0 0.0
    %1329 = vmatmul.mubr.f32.gmra.mrb[0].mxu0 %v977
    %v1330 = vpop.f32.mrb[0].mxu0
    %v1331 = vadd.f32 %v968, %v1330
    %v1332 = vpop.f32.mrb[0].mxu0
    %v1333 = vadd.f32 %v968, %v1332
    %1334 = vdwg.mxu0
    %v1335 = vmax.f32 %v1046, 0.0
    %v1336 = vmax.f32 %v1048, 0.0
    %v1337 = vmax.f32 %v1135, 0.0
    %v1338 = vmax.f32 %v1137, 0.0
    %v1339 = vmax.f32 %v1224, 0.0
    %v1340 = vmax.f32 %v1226, 0.0
    %v1341 = vmax.f32 %v1313, 0.0
    %v1342 = vmax.f32 %v1315, 0.0
    %v1343 = vmax.f32 %v1052, 0.0
    %v1344 = vmax.f32 %v1054, 0.0
    %v1345 = vmax.f32 %v1141, 0.0
    %v1346 = vmax.f32 %v1143, 0.0
    %v1347 = vmax.f32 %v1230, 0.0
    %v1348 = vmax.f32 %v1232, 0.0
    %v1349 = vmax.f32 %v1319, 0.0
    %v1350 = vmax.f32 %v1321, 0.0
    %v1351 = vmax.f32 %v1058, 0.0
    %v1352 = vmax.f32 %v1060, 0.0
    %v1353 = vmax.f32 %v1147, 0.0
    %v1354 = vmax.f32 %v1149, 0.0
    %v1355 = vmax.f32 %v1236, 0.0
    %v1356 = vmax.f32 %v1238, 0.0
    %v1357 = vmax.f32 %v1325, 0.0
    %v1358 = vmax.f32 %v1327, 0.0
    %v1359 = vmax.f32 %v1064, 0.0
    %v1360 = vmax.f32 %v1066, 0.0
    %v1361 = vmax.f32 %v1153, 0.0
    %v1362 = vmax.f32 %v1155, 0.0
    %v1363 = vmax.f32 %v1242, 0.0
    %v1364 = vmax.f32 %v1244, 0.0
    %v1365 = vmax.f32 %v1331, 0.0
    %v1366 = vmax.f32 %v1333, 0.0
    %1368 = vset.pattern.permute.xlu0 32
    %1369 = vperm.xlu0 %1368, %v148
    %v1370 = vpop.permute.xlu0 %1369
    %v1372 = vsel %vm970, %v148, 0
    %1374 = vmatprep.subr.mxu0 %v1336
    %1375 = vmatpush1.msra.mxu0 %v1335
    %1376 = vmatprep.subr.mxu0 %v1344
    %1377 = vmatpush1.msra.mxu0 %v1343
    %1378 = vmatprep.subr.mxu0 %v1352
    %1379 = vmatpush1.msra.mxu0 %v1351
    %1380 = vmatprep.subr.mxu0 %v1360
    %1381 = vmatpush1.msra.mxu0 %v1359
    %1382 = vmatprep.subr.mxu0 0.0
    %1383 = vmatpush1.msra.mxu0 0.0
    %1384 = vmatprep.subr.mxu0 0.0
    %1385 = vmatpush1.msra.mxu0 0.0
    %1386 = vmatprep.subr.mxu0 0.0
    %1387 = vmatpush1.msra.mxu0 0.0
    %1388 = vmatprep.subr.mxu0 0.0
    %1389 = vmatpush1.msra.mxu0 0.0
    %1390 = vmatprep.subr.mxu0 0.0
    %1391 = vmatpush1.msra.mxu0 0.0
    %1392 = vmatprep.subr.mxu0 0.0
    %1393 = vmatpush1.msra.mxu0 0.0
    %1394 = vmatprep.subr.mxu0 0.0
    %1395 = vmatpush1.msra.mxu0 0.0
    %1396 = vmatprep.subr.mxu0 0.0
    %1397 = vmatpush1.msra.mxu0 0.0
    %1398 = vmatprep.subr.mxu0 0.0
    %1399 = vmatpush1.msra.mxu0 0.0
    %1400 = vmatprep.subr.mxu0 0.0
    %1401 = vmatpush1.msra.mxu0 0.0
    %1402 = vmatprep.subr.mxu0 0.0
    %1403 = vmatpush1.msra.mxu0 0.0
    %1404 = vmatprep.subr.mxu0 0.0
    %1405 = vmatpush1.msra.mxu0 0.0
    %1406 = vmatprep.subr.mxu0 0.0
    %1407 = vmatpush1.msra.mxu0 0.0
    %1408 = vmatprep.subr.mxu0 0.0
    %1409 = vmatpush1.msra.mxu0 0.0
    %1410 = vmatprep.subr.mxu0 0.0
    %1411 = vmatpush1.msra.mxu0 0.0
    %1412 = vmatprep.subr.mxu0 0.0
    %1413 = vmatpush1.msra.mxu0 0.0
    %1414 = vmatprep.subr.mxu0 0.0
    %1415 = vmatpush1.msra.mxu0 0.0
    %1416 = vmatprep.subr.mxu0 0.0
    %1417 = vmatpush1.msra.mxu0 0.0
    %1418 = vmatprep.subr.mxu0 0.0
    %1419 = vmatpush1.msra.mxu0 0.0
    %1420 = vmatprep.subr.mxu0 0.0
    %1421 = vmatpush1.msra.mxu0 0.0
    %1422 = vmatprep.subr.mxu0 0.0
    %1423 = vmatpush1.msra.mxu0 0.0
    %1424 = vmatprep.subr.mxu0 0.0
    %1425 = vmatpush1.msra.mxu0 0.0
    %1426 = vmatprep.subr.mxu0 0.0
    %1427 = vmatpush1.msra.mxu0 0.0
    %1428 = vmatprep.subr.mxu0 0.0
    %1429 = vmatpush1.msra.mxu0 0.0
    %1430 = vmatprep.subr.mxu0 0.0
    %1431 = vmatpush1.msra.mxu0 0.0
    %1432 = vmatprep.subr.mxu0 0.0
    %1433 = vmatpush1.msra.mxu0 0.0
    %1434 = vmatprep.subr.mxu0 0.0
    %1435 = vmatpush1.msra.mxu0 0.0
    %1436 = vmatprep.subr.mxu0 0.0
    %1437 = vmatpush1.msra.mxu0 0.0
    %1438 = vmatprep.mubr.f32.mxu0 0.0
    %1439 = vmatmul.mubr.f32.gmra.mrb[0].mxu0 %v1372
    %v1440 = vpop.f32.mrb[0].mxu0
    %v1441 = vadd.f32 %v1370, %v1440
    %v1442 = vpop.f32.mrb[0].mxu0
    %v1443 = vadd.f32 %v1370, %v1442
    %1444 = vdwg.mxu0
    %1445 = vmatprep.subr.mxu0 %v1338
    %1446 = vmatpush1.msra.mxu0 %v1337
    %1447 = vmatprep.subr.mxu0 %v1346
    %1448 = vmatpush1.msra.mxu0 %v1345
    %1449 = vmatprep.subr.mxu0 %v1354
    %1450 = vmatpush1.msra.mxu0 %v1353
    %1451 = vmatprep.subr.mxu0 %v1362
    %1452 = vmatpush1.msra.mxu0 %v1361
    %1453 = vmatprep.subr.mxu0 0.0
    %1454 = vmatpush1.msra.mxu0 0.0
    %1455 = vmatprep.subr.mxu0 0.0
    %1456 = vmatpush1.msra.mxu0 0.0
    %1457 = vmatprep.subr.mxu0 0.0
    %1458 = vmatpush1.msra.mxu0 0.0
    %1459 = vmatprep.subr.mxu0 0.0
    %1460 = vmatpush1.msra.mxu0 0.0
    %1461 = vmatprep.subr.mxu0 0.0
    %1462 = vmatpush1.msra.mxu0 0.0
    %1463 = vmatprep.subr.mxu0 0.0
    %1464 = vmatpush1.msra.mxu0 0.0
    %1465 = vmatprep.subr.mxu0 0.0
    %1466 = vmatpush1.msra.mxu0 0.0
    %1467 = vmatprep.subr.mxu0 0.0
    %1468 = vmatpush1.msra.mxu0 0.0
    %1469 = vmatprep.subr.mxu0 0.0
    %1470 = vmatpush1.msra.mxu0 0.0
    %1471 = vmatprep.subr.mxu0 0.0
    %1472 = vmatpush1.msra.mxu0 0.0
    %1473 = vmatprep.subr.mxu0 0.0
    %1474 = vmatpush1.msra.mxu0 0.0
    %1475 = vmatprep.subr.mxu0 0.0
    %1476 = vmatpush1.msra.mxu0 0.0
    %1477 = vmatprep.subr.mxu0 0.0
    %1478 = vmatpush1.msra.mxu0 0.0
    %1479 = vmatprep.subr.mxu0 0.0
    %1480 = vmatpush1.msra.mxu0 0.0
    %1481 = vmatprep.subr.mxu0 0.0
    %1482 = vmatpush1.msra.mxu0 0.0
    %1483 = vmatprep.subr.mxu0 0.0
    %1484 = vmatpush1.msra.mxu0 0.0
    %1485 = vmatprep.subr.mxu0 0.0
    %1486 = vmatpush1.msra.mxu0 0.0
    %1487 = vmatprep.subr.mxu0 0.0
    %1488 = vmatpush1.msra.mxu0 0.0
    %1489 = vmatprep.subr.mxu0 0.0
    %1490 = vmatpush1.msra.mxu0 0.0
    %1491 = vmatprep.subr.mxu0 0.0
    %1492 = vmatpush1.msra.mxu0 0.0
    %1493 = vmatprep.subr.mxu0 0.0
    %1494 = vmatpush1.msra.mxu0 0.0
    %1495 = vmatprep.subr.mxu0 0.0
    %1496 = vmatpush1.msra.mxu0 0.0
    %1497 = vmatprep.subr.mxu0 0.0
    %1498 = vmatpush1.msra.mxu0 0.0
    %1499 = vmatprep.subr.mxu0 0.0
    %1500 = vmatpush1.msra.mxu0 0.0
    %1501 = vmatprep.subr.mxu0 0.0
    %1502 = vmatpush1.msra.mxu0 0.0
    %1503 = vmatprep.subr.mxu0 0.0
    %1504 = vmatpush1.msra.mxu0 0.0
    %1505 = vmatprep.subr.mxu0 0.0
    %1506 = vmatpush1.msra.mxu0 0.0
    %1507 = vmatprep.subr.mxu0 0.0
    %1508 = vmatpush1.msra.mxu0 0.0
    %1509 = vmatprep.mubr.f32.mxu0 0.0
    %1510 = vmatmul.mubr.f32.gmra.mrb[0].mxu0 %v1372
    %v1511 = vpop.f32.mrb[0].mxu0
    %v1512 = vadd.f32 %v1370, %v1511
    %v1513 = vpop.f32.mrb[0].mxu0
    %v1514 = vadd.f32 %v1370, %v1513
    %1515 = vdwg.mxu0
    %1516 = vmatprep.subr.mxu0 %v1340
    %1517 = vmatpush1.msra.mxu0 %v1339
    %1518 = vmatprep.subr.mxu0 %v1348
    %1519 = vmatpush1.msra.mxu0 %v1347
    %1520 = vmatprep.subr.mxu0 %v1356
    %1521 = vmatpush1.msra.mxu0 %v1355
    %1522 = vmatprep.subr.mxu0 %v1364
    %1523 = vmatpush1.msra.mxu0 %v1363
    %1524 = vmatprep.subr.mxu0 0.0
    %1525 = vmatpush1.msra.mxu0 0.0
    %1526 = vmatprep.subr.mxu0 0.0
    %1527 = vmatpush1.msra.mxu0 0.0
    %1528 = vmatprep.subr.mxu0 0.0
    %1529 = vmatpush1.msra.mxu0 0.0
    %1530 = vmatprep.subr.mxu0 0.0
    %1531 = vmatpush1.msra.mxu0 0.0
    %1532 = vmatprep.subr.mxu0 0.0
    %1533 = vmatpush1.msra.mxu0 0.0
    %1534 = vmatprep.subr.mxu0 0.0
    %1535 = vmatpush1.msra.mxu0 0.0
    %1536 = vmatprep.subr.mxu0 0.0
    %1537 = vmatpush1.msra.mxu0 0.0
    %1538 = vmatprep.subr.mxu0 0.0
    %1539 = vmatpush1.msra.mxu0 0.0
    %1540 = vmatprep.subr.mxu0 0.0
    %1541 = vmatpush1.msra.mxu0 0.0
    %1542 = vmatprep.subr.mxu0 0.0
    %1543 = vmatpush1.msra.mxu0 0.0
    %1544 = vmatprep.subr.mxu0 0.0
    %1545 = vmatpush1.msra.mxu0 0.0
    %1546 = vmatprep.subr.mxu0 0.0
    %1547 = vmatpush1.msra.mxu0 0.0
    %1548 = vmatprep.subr.mxu0 0.0
    %1549 = vmatpush1.msra.mxu0 0.0
    %1550 = vmatprep.subr.mxu0 0.0
    %1551 = vmatpush1.msra.mxu0 0.0
    %1552 = vmatprep.subr.mxu0 0.0
    %1553 = vmatpush1.msra.mxu0 0.0
    %1554 = vmatprep.subr.mxu0 0.0
    %1555 = vmatpush1.msra.mxu0 0.0
    %1556 = vmatprep.subr.mxu0 0.0
    %1557 = vmatpush1.msra.mxu0 0.0
    %1558 = vmatprep.subr.mxu0 0.0
    %1559 = vmatpush1.msra.mxu0 0.0
    %1560 = vmatprep.subr.mxu0 0.0
    %1561 = vmatpush1.msra.mxu0 0.0
    %1562 = vmatprep.subr.mxu0 0.0
    %1563 = vmatpush1.msra.mxu0 0.0
    %1564 = vmatprep.subr.mxu0 0.0
    %1565 = vmatpush1.msra.mxu0 0.0
    %1566 = vmatprep.subr.mxu0 0.0
    %1567 = vmatpush1.msra.mxu0 0.0
    %1568 = vmatprep.subr.mxu0 0.0
    %1569 = vmatpush1.msra.mxu0 0.0
    %1570 = vmatprep.subr.mxu0 0.0
    %1571 = vmatpush1.msra.mxu0 0.0
    %1572 = vmatprep.subr.mxu0 0.0
    %1573 = vmatpush1.msra.mxu0 0.0
    %1574 = vmatprep.subr.mxu0 0.0
    %1575 = vmatpush1.msra.mxu0 0.0
    %1576 = vmatprep.subr.mxu0 0.0
    %1577 = vmatpush1.msra.mxu0 0.0
    %1578 = vmatprep.subr.mxu0 0.0
    %1579 = vmatpush1.msra.mxu0 0.0
    %1580 = vmatprep.mubr.f32.mxu0 0.0
    %1581 = vmatmul.mubr.f32.gmra.mrb[0].mxu0 %v1372
    %v1582 = vpop.f32.mrb[0].mxu0
    %v1583 = vadd.f32 %v1370, %v1582
    %v1584 = vpop.f32.mrb[0].mxu0
    %v1585 = vadd.f32 %v1370, %v1584
    %1586 = vdwg.mxu0
    %1587 = vmatprep.subr.mxu0 %v1342
    %1588 = vmatpush1.msra.mxu0 %v1341
    %1589 = vmatprep.subr.mxu0 %v1350
    %1590 = vmatpush1.msra.mxu0 %v1349
    %1591 = vmatprep.subr.mxu0 %v1358
    %1592 = vmatpush1.msra.mxu0 %v1357
    %1593 = vmatprep.subr.mxu0 %v1366
    %1594 = vmatpush1.msra.mxu0 %v1365
    %1595 = vmatprep.subr.mxu0 0.0
    %1596 = vmatpush1.msra.mxu0 0.0
    %1597 = vmatprep.subr.mxu0 0.0
    %1598 = vmatpush1.msra.mxu0 0.0
    %1599 = vmatprep.subr.mxu0 0.0
    %1600 = vmatpush1.msra.mxu0 0.0
    %1601 = vmatprep.subr.mxu0 0.0
    %1602 = vmatpush1.msra.mxu0 0.0
    %1603 = vmatprep.subr.mxu0 0.0
    %1604 = vmatpush1.msra.mxu0 0.0
    %1605 = vmatprep.subr.mxu0 0.0
    %1606 = vmatpush1.msra.mxu0 0.0
    %1607 = vmatprep.subr.mxu0 0.0
    %1608 = vmatpush1.msra.mxu0 0.0
    %1609 = vmatprep.subr.mxu0 0.0
    %1610 = vmatpush1.msra.mxu0 0.0
    %1611 = vmatprep.subr.mxu0 0.0
    %1612 = vmatpush1.msra.mxu0 0.0
    %1613 = vmatprep.subr.mxu0 0.0
    %1614 = vmatpush1.msra.mxu0 0.0
    %1615 = vmatprep.subr.mxu0 0.0
    %1616 = vmatpush1.msra.mxu0 0.0
    %1617 = vmatprep.subr.mxu0 0.0
    %1618 = vmatpush1.msra.mxu0 0.0
    %1619 = vmatprep.subr.mxu0 0.0
    %1620 = vmatpush1.msra.mxu0 0.0
    %1621 = vmatprep.subr.mxu0 0.0
    %1622 = vmatpush1.msra.mxu0 0.0
    %1623 = vmatprep.subr.mxu0 0.0
    %1624 = vmatpush1.msra.mxu0 0.0
    %1625 = vmatprep.subr.mxu0 0.0
    %1626 = vmatpush1.msra.mxu0 0.0
    %1627 = vmatprep.subr.mxu0 0.0
    %1628 = vmatpush1.msra.mxu0 0.0
    %1629 = vmatprep.subr.mxu0 0.0
    %1630 = vmatpush1.msra.mxu0 0.0
    %1631 = vmatprep.subr.mxu0 0.0
    %1632 = vmatpush1.msra.mxu0 0.0
    %1633 = vmatprep.subr.mxu0 0.0
    %1634 = vmatpush1.msra.mxu0 0.0
    %1635 = vmatprep.subr.mxu0 0.0
    %1636 = vmatpush1.msra.mxu0 0.0
    %1637 = vmatprep.subr.mxu0 0.0
    %1638 = vmatpush1.msra.mxu0 0.0
    %1639 = vmatprep.subr.mxu0 0.0
    %1640 = vmatpush1.msra.mxu0 0.0
    %1641 = vmatprep.subr.mxu0 0.0
    %1642 = vmatpush1.msra.mxu0 0.0
    %1643 = vmatprep.subr.mxu0 0.0
    %1644 = vmatpush1.msra.mxu0 0.0
    %1645 = vmatprep.subr.mxu0 0.0
    %1646 = vmatpush1.msra.mxu0 0.0
    %1647 = vmatprep.subr.mxu0 0.0
    %1648 = vmatpush1.msra.mxu0 0.0
    %1649 = vmatprep.subr.mxu0 0.0
    %1650 = vmatpush1.msra.mxu0 0.0
    %1651 = vmatprep.mubr.f32.mxu0 0.0
    %1652 = vmatmul.mubr.f32.gmra.mrb[0].mxu0 %v1372
    %v1653 = vpop.f32.mrb[0].mxu0
    %v1654 = vadd.f32 %v1370, %v1653
    %v1655 = vpop.f32.mrb[0].mxu0
    %v1656 = vadd.f32 %v1370, %v1655
    %1657 = vdwg.mxu0
    %v1666 = vcombine.low %v1441, %v1443
    %v1667 = vcombine.low %v1512, %v1514
    %v1668 = vcombine.low %v1583, %v1585
    %v1669 = vcombine.low %v1654, %v1656
    %v1671 = vunpack.c.l.s4 1966171168
    %v1672 = vunpack.c.0.s8 %v1671
    %v1673 = vlaneseq
    %v1674 = vshrl.u32 %v1673, 7
    %v1675 = vsub.s32 %v1672, %v1674
    %v1676 = vrot.slane %v1666, %v1675
    %v1678 = vunpack.c.l.s4 1966171168
    %v1679 = vunpack.c.0.s8 %v1678
    %v1680 = vlaneseq
    %v1681 = vshrl.u32 %v1680, 7
    %v1682 = vsub.s32 %v1679, %v1681
    %v1683 = vrot.slane %v1667, %v1682
    %v1685 = vunpack.c.l.s4 1966171168
    %v1686 = vunpack.c.0.s8 %v1685
    %v1687 = vlaneseq
    %v1688 = vshrl.u32 %v1687, 7
    %v1689 = vsub.s32 %v1686, %v1688
    %v1690 = vrot.slane %v1668, %v1689
    %v1692 = vunpack.c.l.s4 1966171168
    %v1693 = vunpack.c.0.s8 %v1692
    %v1694 = vlaneseq
    %v1695 = vshrl.u32 %v1694, 7
    %v1696 = vsub.s32 %v1693, %v1695
    %v1697 = vrot.slane %v1669, %v1696
    %v1698 = vcombine.low %v1676, %v1683
    %v1699 = vcombine.low %v1690, %v1697
    %v1701 = vunpack.c.l.s4 1966171168
    %v1702 = vunpack.c.0.s8 %v1701
    %v1703 = vlaneseq
    %v1704 = vshrl.u32 %v1703, 7
    %v1705 = vsub.s32 %v1702, %v1704
    %v1706 = vrot.slane %v1698, %v1705
    %v1708 = vunpack.c.l.s4 1966171168
    %v1709 = vunpack.c.0.s8 %v1708
    %v1710 = vlaneseq
    %v1711 = vshrl.u32 %v1710, 7
    %v1712 = vsub.s32 %v1709, %v1711
    %v1713 = vrot.slane %v1699, %v1712
    %v1714 = vcombine.low %v1706, %v1713
    %1716 = vst [vmem:[#allocation2] sm:$0xff] %v1714
    // Predicated region
    $region10: #{tpu_custom_call.1} parent=1 // pred_check
      _
    $region11: #{tpu_custom_call.1} parent=1 // pred_check_branch
      %1718 = sbr.rel (0) target = $region13
    $region12: #{tpu_custom_call.1} parent=1 // pred_region
      %s1720 = ssub.s32 128, 128
      %1721 = vsyncadd [#allocation3], %s1720
      %s1723 = sshll.u32 [#allocation2], 4
      %s1724 = int_to_ptr.vmem [resolvable:$true] %s1723
      %1726 = dma.vmem_to_hbm [thread:$0]  %s1724, 128, %s2, [#allocation3]
    $region13: #{tpu_custom_call.1} parent=1 // pred_fallthru
      _
    // Predicated region
    $region14: #{tpu_custom_call.1} parent=1 // pred_check
      _
    $region15: #{tpu_custom_call.1} parent=1 // pred_check_branch
      %1728 = sbr.rel (0) target = $region17
    $region16: #{tpu_custom_call.1} parent=1 // pred_region
      %1729 = dma.done [#allocation3], 128
    $region17: #{tpu_custom_call.1} parent=1 // pred_fallthru
      _
    %1730 = vsyncpa [#allocation3], 1

</llo_original>
